<compile_context>
chip_gen: v7x
topology: tpu7x:2x2x1
jax: 0.10.0
libtpu: 0.0.40
codegen_flags: <defaults>
</compile_context>

<pallas_src>
import jax
import jax.numpy as jnp
from jax import lax
from jax.experimental import pallas as pl
from jax.experimental.pallas import tpu as pltpu


# ----------------------------- small helpers ---------------------------------

def _round_up(x, m):
    return ((x + m - 1) // m) * m


def _cdiv(a, b):
    return -(-a // b)


def _tile_bytes(shape, itemsize):
    """VMEM footprint of one buffer with (sublane, lane) tile padding applied."""
    s = list(shape)
    s[-1] = _round_up(s[-1], 128)
    if len(s) >= 2:
        s[-2] = _round_up(s[-2], max(8, 32 // itemsize))
    n = itemsize
    for d in s:
        n *= d
    return n


def _vmem_capacity_bytes():
    """Generation-aware VMEM capacity; conservative fallback when no TPU is visible."""
    try:
        info = pltpu.get_tpu_info()
        cap = int(getattr(info, "vmem_capacity_bytes", 0))
        if cap > 0:
            return cap
    except Exception:
        pass
    return 64 * 1024 * 1024  # v7x per-TensorCore VMEM (worst case)


def _step_vmem_bytes(TB, S, TKEY, W, Zp, c_itemsize):
    """Per-grid-step VMEM footprint (padded tile sizes, double-buffered pipeline blocks)."""
    f32 = 4
    dbl = 2
    blocks = (dbl * _tile_bytes((TB, S, W), c_itemsize)             # q block
              + dbl * 2 * _tile_bytes((TB, TKEY, W), c_itemsize)    # k, v blocks
              + dbl * 3 * _tile_bytes((W, Zp), c_itemsize)          # weights (resident)
              + dbl * _tile_bytes((TB, S, Zp), f32))                # output block
    scratch = _tile_bytes((TB, S, Zp), c_itemsize)                  # cached wq
    inter = (2 * _tile_bytes((TB, TKEY, Zp), c_itemsize)            # wk, wv
             + 3 * _tile_bytes((TB, S, TKEY), f32)                  # scores, exp, p
             + _tile_bytes((TB, S, TKEY), c_itemsize)               # p cast for the MXU
             + _tile_bytes((TB, S, Zp), f32)                        # per-tile output contribution
             + 2 * _tile_bytes((TB, 1, TKEY), f32))                 # softmax max / denom rows
    return blocks + scratch + inter


def _choose_tb(N, S, TKEY, W, Zp, c_itemsize, vmem_budget, target_rows):
    """Pick the batch block size: padded-size VMEM aware, pad-avoiding, v7x-friendly."""
    tb = max(1, min(N, _cdiv(target_rows, max(S, 1))))
    while tb > 1 and _step_vmem_bytes(tb, S, TKEY, W, Zp, c_itemsize) > vmem_budget:
        tb = max(1, tb // 2)

    def score(cand):
        g = _cdiv(N, cand)
        no_pad = (N % cand == 0)                   # avoid the jnp.pad HBM round-trip
        both_cores = (g % 2 == 0) or (g >= 4)      # keep both v7x TensorCores busy / balanced
        rows = min(cand * S, 256)                  # but never starve the MXU M dim for it
        return (no_pad, both_cores, rows, cand)

    lo = max(1, tb // 2)
    return max(range(lo, tb + 1), key=score)


# ------------------------------- kernel --------------------------------------

def make_attention_kernel(S, TKEY, W, Zp, TB, inv_w, compute_dtype):
    """Kernel body: grid = (batch blocks [parallel], key tiles [arbitrary])."""

    def attention_kernel(q_ref, k_ref, v_ref, wvT_ref, wkT_ref, wqT_ref, o_ref, wq_sc):
        kt = pl.program_id(1)

        @pl.when(kt == 0)
        def _():
            # Project the full query block once per batch block and cache it; zero the
            # resident f32 output accumulator. (q reshape is layout-free when S % 8 == 0.)
            q2 = q_ref[...].reshape(TB * S, W)
            wq = jnp.dot(q2, wqT_ref[...], preferred_element_type=jnp.float32)
            wq_sc[...] = wq.reshape(TB, S, Zp).astype(wq_sc.dtype)
            o_ref[...] = jnp.zeros(o_ref.shape, o_ref.dtype)

        # Key/value projections for this key tile: one big-M (TB*TKEY, W) @ (W, Zp) each.
        k2 = k_ref[...].reshape(TB * TKEY, W)
        v2 = v_ref[...].reshape(TB * TKEY, W)
        wk = jnp.dot(k2, wkT_ref[...], preferred_element_type=jnp.float32)
        wv = jnp.dot(v2, wvT_ref[...], preferred_element_type=jnp.float32)
        wk = wk.reshape(TB, TKEY, Zp).astype(compute_dtype)
        wv = wv.reshape(TB, TKEY, Zp).astype(compute_dtype)

        # scores[b, s, j] = <wq[b, s, :], wk[b, j, :]>   == bmm(wq, wk.permute(0, 2, 1)) tile
        scores = lax.dot_general(
            wq_sc[...], wk,
            dimension_numbers=(((2,), (2,)), ((0,), (0,))),
            preferred_element_type=jnp.float32,
        )  # (TB, S, TKEY)

        # torch softmax(dim=1): normalize over the *query* axis (axis 1). Every key column is
        # normalized independently, so each key tile is self-contained (no online max/sum).
        m = jnp.max(scores, axis=1, keepdims=True)          # (TB, 1, TKEY)
        e = jnp.exp(scores - m)                             # (TB, S, TKEY)
        denom = jnp.sum(e, axis=1, keepdims=True)           # (TB, 1, TKEY)
        # Exact normalization; the post-softmax 1/W scale is fused into the small row divide.
        p = e * (inv_w / denom)

        # out[b, s, z] += sum_j p[b, s, j] * wv[b, j, z]    == bmm(wqk, wv) tile
        o_ref[...] += lax.dot_general(
            p.astype(compute_dtype), wv,
            dimension_numbers=(((2,), (1,)), ((0,), (0,))),
            preferred_element_type=jnp.float32,
        )

    return attention_kernel


# ------------------------------- wrapper --------------------------------------

def pallas_attention(v, k, q, WV, WK, WQ, *, compute_dtype=jnp.bfloat16,
                     target_rows=1024, max_key_tile=512):
    """b_attention: v, k, q of shape (N, S, W); WV/WK/WQ of shape (Z, W). Returns (N, S, Z) f32."""
    N, S, W = v.shape
    Z = WV.shape[0]
    Zp = _round_up(Z, 128)                          # lane-dense projections and output stores
    c_itemsize = jnp.dtype(compute_dtype).itemsize
    sub = max(8, 32 // c_itemsize)                  # sublane tile of the compute dtype

    cap = _vmem_capacity_bytes()
    vmem_budget = int(0.55 * cap)
    vmem_limit = min(int(0.75 * cap), 100 * 1024 * 1024)

    # Key-axis tile: multiple of the sublane tile so the in-kernel (TB,TKEY,W)<->(TB*TKEY,W)
    # reshapes are layout-free; shrink TKEY (after TB) until the footprint fits the budget.
    TKEY = min(_round_up(S, sub), _round_up(max_key_tile, sub))
    while True:
        TB = _choose_tb(N, S, TKEY, W, Zp, c_itemsize, vmem_budget, target_rows)
        if _step_vmem_bytes(TB, S, TKEY, W, Zp, c_itemsize) <= vmem_budget or TKEY <= sub:
            break
        TKEY = max(sub, _round_up(TKEY // 2, sub))

    G = _cdiv(N, TB)
    N_pad = G * TB
    KT = _cdiv(S, TKEY)
    S_kp = KT * TKEY

    vp, kp, qp = v, k, q
    if N_pad != N:
        # Last resort: the chooser prefers TB | N so this HBM copy is normally skipped.
        bp = ((0, N_pad - N), (0, 0), (0, 0))
        vp, kp, qp = jnp.pad(v, bp), jnp.pad(k, bp), jnp.pad(q, bp)
    if S_kp != S:
        # Zero key rows project to zero wv rows -> they contribute exactly nothing.
        sp = ((0, 0), (0, S_kp - S), (0, 0))
        vp, kp = jnp.pad(vp, sp), jnp.pad(kp, sp)

    q3 = qp.astype(compute_dtype)                   # (N_pad, S,    W)
    k3 = kp.astype(compute_dtype)                   # (N_pad, S_kp, W)
    v3 = vp.astype(compute_dtype)                   # (N_pad, S_kp, W)

    def prep_weight(w):                             # (Z, W) -> (W, Zp), zero lane pad
        wt = jnp.transpose(w).astype(compute_dtype)
        return jnp.pad(wt, ((0, 0), (0, Zp - Z))) if Zp != Z else wt

    WVt, WKt, WQt = prep_weight(WV), prep_weight(WK), prep_weight(WQ)

    kernel = make_attention_kernel(S, TKEY, W, Zp, TB, 1.0 / float(W), compute_dtype)

    q_spec = pl.BlockSpec((TB, S, W), lambda b, t: (b, 0, 0))       # constant over key tiles
    kv_spec = pl.BlockSpec((TB, TKEY, W), lambda b, t: (b, t, 0))
    w_spec = pl.BlockSpec((W, Zp), lambda b, t: (0, 0))             # constant -> stays resident
    out_spec = pl.BlockSpec((TB, S, Zp), lambda b, t: (b, 0, 0))    # resident accumulator

    out = pl.pallas_call(
        kernel,
        out_shape=jax.ShapeDtypeStruct((N_pad, S, Zp), jnp.float32),
        grid_spec=pltpu.PrefetchScalarGridSpec(
            num_scalar_prefetch=0,
            grid=(G, KT),
            in_specs=[q_spec, kv_spec, kv_spec, w_spec, w_spec, w_spec],
            out_specs=out_spec,
            scratch_shapes=[pltpu.VMEM((TB, S, Zp), compute_dtype)],   # cached wq projection
        ),
        compiler_params=pltpu.CompilerParams(
            dimension_semantics=("parallel", "arbitrary"),
            vmem_limit_bytes=vmem_limit,
        ),
    )(q3, k3, v3, WVt, WKt, WQt)

    return out[:N, :, :Z]


# ------------------------------ reference -------------------------------------

def reference_attention(v, k, q, WV, WK, WQ):
    """Pure-JAX reference mirroring the PyTorch b_attention exactly (accurate f32)."""
    W = v.shape[-1]
    hi = jax.lax.Precision.HIGHEST
    wv = jnp.einsum("nsw,zw->nsz", v, WV, precision=hi)
    wk = jnp.einsum("nsw,zw->nsz", k, WK, precision=hi)
    wq = jnp.einsum("nsw,zw->nsz", q, WQ, precision=hi)
    s = jnp.einsum("nsz,ntz->nst", wq, wk, precision=hi)   # bmm(wq, wk.permute(0, 2, 1))
    wqk = jax.nn.softmax(s, axis=1) / W
    return jnp.einsum("nst,ntz->nsz", wqk, wv, precision=hi)


if __name__ == "__main__":
    # N sentences, S words each, W word size (input_shape), Z attention-encoding size (output).
    N, S, W, Z = 6, 8, 4, 32

    key = jax.random.PRNGKey(0)
    kv_, kk_, kq_, kwv, kwk, kwq = jax.random.split(key, 6)

    v = jax.random.normal(kv_, (N, S, W), dtype=jnp.float32)
    k = jax.random.normal(kk_, (N, S, W), dtype=jnp.float32)
    q = jax.random.normal(kq_, (N, S, W), dtype=jnp.float32)

    # torch.nn.Parameter(torch.randn(output, input)) convention: shape (Z, W). Scaled so the
    # query-axis softmax is well-conditioned for the bf16-vs-f32 comparison below.
    WV = 0.2 * jax.random.normal(kwv, (Z, W), dtype=jnp.float32)
    WK = 0.2 * jax.random.normal(kwk, (Z, W), dtype=jnp.float32)
    WQ = 0.2 * jax.random.normal(kwq, (Z, W), dtype=jnp.float32)

    out = jax.block_until_ready(pallas_attention(v, k, q, WV, WK, WQ))
    ref = reference_attention(v, k, q, WV, WK, WQ)

    assert out.shape == (N, S, Z)
    err = float(jnp.max(jnp.abs(out - ref)))
    scale = float(jnp.max(jnp.abs(ref)))
    # bf16 MXU operands (f32 accumulation, exact f32 softmax) vs an accurate f32 reference:
    # a few-permille relative error; 5% of the output scale is a safe, still-meaningful bound.
    assert err <= 5e-2 * scale + 2e-3, f"Pallas mismatch: max_err={err:.3e} scale={scale:.3e}"

    print("KERNEL_OK")
</pallas_src>

<mosaic_0001>
module attributes {stable_mosaic.version = 11 : i64} {
  func.func @attention_kernel(%arg0: i32, %arg1: i32, %arg2: memref<3x8x4xbf16, #tpu.memory_space<vmem>>, %arg3: memref<3x16x4xbf16, #tpu.memory_space<vmem>>, %arg4: memref<3x16x4xbf16, #tpu.memory_space<vmem>>, %arg5: memref<4x128xbf16, #tpu.memory_space<vmem>>, %arg6: memref<4x128xbf16, #tpu.memory_space<vmem>>, %arg7: memref<4x128xbf16, #tpu.memory_space<vmem>>, %arg8: memref<3x8x128xf32, #tpu.memory_space<vmem>>, %arg9: memref<3x8x128xbf16, #tpu.memory_space<vmem>>) attributes {dimension_semantics = [#tpu.dimension_semantics<parallel>, #tpu.dimension_semantics<arbitrary>], iteration_bounds = array<i64: 2, 1>, scalar_prefetch = 0 : i64, scratch_operands = 1 : i64, tpu.core_type = #tpu.core_type<tc>, window_params = [{transform_indices = @transform_0, window_bounds = array<i64: 3, 8, 4>}, {transform_indices = @transform_1, window_bounds = array<i64: 3, 16, 4>}, {transform_indices = @transform_2, window_bounds = array<i64: 3, 16, 4>}, {pipeline_mode = #tpu.pipeline_mode<synchronous>, transform_indices = @transform_3, window_bounds = array<i64: 4, 128>}, {pipeline_mode = #tpu.pipeline_mode<synchronous>, transform_indices = @transform_4, window_bounds = array<i64: 4, 128>}, {pipeline_mode = #tpu.pipeline_mode<synchronous>, transform_indices = @transform_5, window_bounds = array<i64: 4, 128>}, {transform_indices = @transform_6, window_bounds = array<i64: 3, 8, 128>}]} {
    %c0_i32 = arith.constant 0 : i32
    %0 = arith.cmpi eq, %arg1, %c0_i32 : i32
    %1 = arith.extui %0 : i1 to i32
    %c0_i32_0 = arith.constant 0 : i32
    %2 = arith.cmpi ne, %1, %c0_i32_0 : i32
    scf.if %2 {
      %c0_25 = arith.constant 0 : index
      %c0_26 = arith.constant 0 : index
      %c0_27 = arith.constant 0 : index
      %33 = vector.load %arg2[%c0_25, %c0_26, %c0_27] : memref<3x8x4xbf16, #tpu.memory_space<vmem>>, vector<3x8x4xbf16>
      %34 = vector.shape_cast %33 : vector<3x8x4xbf16> to vector<24x4xbf16>
      %c0_28 = arith.constant 0 : index
      %c0_29 = arith.constant 0 : index
      %35 = vector.load %arg7[%c0_28, %c0_29] : memref<4x128xbf16, #tpu.memory_space<vmem>>, vector<4x128xbf16>
      %cst_30 = arith.constant dense<0.000000e+00> : vector<24x128xf32>
      %36 = tpu.matmul %34, %35, %cst_30 {dimension_numbers = #tpu.dot_dimension_numbers<[1], [0], [0], [1], [0, 0, 1, 1], [], []>} : vector<24x4xbf16>, vector<4x128xbf16>, vector<24x128xf32> -> vector<24x128xf32>
      %37 = vector.shape_cast %36 : vector<24x128xf32> to vector<3x8x128xf32>
      %38 = arith.truncf %37 : vector<3x8x128xf32> to vector<3x8x128xbf16>
      %c0_31 = arith.constant 0 : index
      %c0_32 = arith.constant 0 : index
      %c0_33 = arith.constant 0 : index
      %39 = vector.load %arg9[%c0_31, %c0_32, %c0_33] : memref<3x8x128xbf16, #tpu.memory_space<vmem>>, vector<3x8x128xbf16>
      tpu.vector_store %arg9[%c0_31, %c0_32, %c0_33], %38 {strides = array<i32>} : memref<3x8x128xbf16, #tpu.memory_space<vmem>>, vector<3x8x128xbf16>,
      %cst_34 = arith.constant 0.000000e+00 : f32
      %40 = vector.broadcast %cst_34 : f32 to vector<3x8x128xf32>
      %c0_35 = arith.constant 0 : index
      %c0_36 = arith.constant 0 : index
      %c0_37 = arith.constant 0 : index
      %41 = vector.load %arg8[%c0_35, %c0_36, %c0_37] : memref<3x8x128xf32, #tpu.memory_space<vmem>>, vector<3x8x128xf32>
      tpu.vector_store %arg8[%c0_35, %c0_36, %c0_37], %40 {strides = array<i32>} : memref<3x8x128xf32, #tpu.memory_space<vmem>>, vector<3x8x128xf32>,
    } else {
    }
    %c0 = arith.constant 0 : index
    %c0_1 = arith.constant 0 : index
    %c0_2 = arith.constant 0 : index
    %3 = vector.load %arg3[%c0, %c0_1, %c0_2] : memref<3x16x4xbf16, #tpu.memory_space<vmem>>, vector<3x16x4xbf16>
    %4 = vector.shape_cast %3 : vector<3x16x4xbf16> to vector<48x4xbf16>
    %c0_3 = arith.constant 0 : index
    %c0_4 = arith.constant 0 : index
    %c0_5 = arith.constant 0 : index
    %5 = vector.load %arg4[%c0_3, %c0_4, %c0_5] : memref<3x16x4xbf16, #tpu.memory_space<vmem>>, vector<3x16x4xbf16>
    %6 = vector.shape_cast %5 : vector<3x16x4xbf16> to vector<48x4xbf16>
    %c0_6 = arith.constant 0 : index
    %c0_7 = arith.constant 0 : index
    %7 = vector.load %arg6[%c0_6, %c0_7] : memref<4x128xbf16, #tpu.memory_space<vmem>>, vector<4x128xbf16>
    %cst = arith.constant dense<0.000000e+00> : vector<48x128xf32>
    %8 = tpu.matmul %4, %7, %cst {dimension_numbers = #tpu.dot_dimension_numbers<[1], [0], [0], [1], [0, 0, 1, 1], [], []>} : vector<48x4xbf16>, vector<4x128xbf16>, vector<48x128xf32> -> vector<48x128xf32>
    %c0_8 = arith.constant 0 : index
    %c0_9 = arith.constant 0 : index
    %9 = vector.load %arg5[%c0_8, %c0_9] : memref<4x128xbf16, #tpu.memory_space<vmem>>, vector<4x128xbf16>
    %cst_10 = arith.constant dense<0.000000e+00> : vector<48x128xf32>
    %10 = tpu.matmul %6, %9, %cst_10 {dimension_numbers = #tpu.dot_dimension_numbers<[1], [0], [0], [1], [0, 0, 1, 1], [], []>} : vector<48x4xbf16>, vector<4x128xbf16>, vector<48x128xf32> -> vector<48x128xf32>
    %11 = vector.shape_cast %8 : vector<48x128xf32> to vector<3x16x128xf32>
    %12 = arith.truncf %11 : vector<3x16x128xf32> to vector<3x16x128xbf16>
    %13 = vector.shape_cast %10 : vector<48x128xf32> to vector<3x16x128xf32>
    %14 = arith.truncf %13 : vector<3x16x128xf32> to vector<3x16x128xbf16>
    %c0_11 = arith.constant 0 : index
    %c0_12 = arith.constant 0 : index
    %c0_13 = arith.constant 0 : index
    %15 = vector.load %arg9[%c0_11, %c0_12, %c0_13] : memref<3x8x128xbf16, #tpu.memory_space<vmem>>, vector<3x8x128xbf16>
    %cst_14 = arith.constant dense<0.000000e+00> : vector<3x8x16xf32>
    %16 = tpu.matmul %15, %12, %cst_14 {dimension_numbers = #tpu.dot_dimension_numbers<[2], [2], [1], [1], [0, 0, 0, 1, 1, 1], [0], [0]>} : vector<3x8x128xbf16>, vector<3x16x128xbf16>, vector<3x8x16xf32> -> vector<3x8x16xf32>
    %cst_15 = arith.constant dense<0xFF800000> : vector<3x16xf32>
    %17 = vector.multi_reduction <maximumf>, %16, %cst_15 [1] : vector<3x8x16xf32> to vector<3x16xf32>
    %18 = vector.shape_cast %17 : vector<3x16xf32> to vector<3x1x16xf32>
    %19 = vector.broadcast %18 : vector<3x1x16xf32> to vector<3x8x16xf32>
    %20 = arith.subf %16, %19 : vector<3x8x16xf32>
    %21 = math.exp %20 : vector<3x8x16xf32>
    %cst_16 = arith.constant dense<0.000000e+00> : vector<3x16xf32>
    %22 = vector.multi_reduction <add>, %21, %cst_16 [1] : vector<3x8x16xf32> to vector<3x16xf32>
    %23 = vector.shape_cast %22 : vector<3x16xf32> to vector<3x1x16xf32>
    %cst_17 = arith.constant 2.500000e-01 : f32
    %24 = vector.broadcast %cst_17 : f32 to vector<3x1x16xf32>
    %25 = arith.divf %24, %23 : vector<3x1x16xf32>
    %26 = vector.broadcast %25 : vector<3x1x16xf32> to vector<3x8x16xf32>
    %27 = arith.mulf %21, %26 : vector<3x8x16xf32>
    %c0_18 = arith.constant 0 : index
    %c0_19 = arith.constant 0 : index
    %c0_20 = arith.constant 0 : index
    %28 = vector.load %arg8[%c0_18, %c0_19, %c0_20] : memref<3x8x128xf32, #tpu.memory_space<vmem>>, vector<3x8x128xf32>
    %29 = arith.truncf %27 : vector<3x8x16xf32> to vector<3x8x16xbf16>
    %cst_21 = arith.constant dense<0.000000e+00> : vector<3x8x128xf32>
    %30 = tpu.matmul %29, %14, %cst_21 {dimension_numbers = #tpu.dot_dimension_numbers<[2], [1], [1], [2], [0, 0, 0, 1, 1, 2], [0], [0]>} : vector<3x8x16xbf16>, vector<3x16x128xbf16>, vector<3x8x128xf32> -> vector<3x8x128xf32>
    %31 = arith.addf %28, %30 : vector<3x8x128xf32>
    %c0_22 = arith.constant 0 : index
    %c0_23 = arith.constant 0 : index
    %c0_24 = arith.constant 0 : index
    %32 = vector.load %arg8[%c0_22, %c0_23, %c0_24] : memref<3x8x128xf32, #tpu.memory_space<vmem>>, vector<3x8x128xf32>
    tpu.vector_store %arg8[%c0_22, %c0_23, %c0_24], %31 {strides = array<i32>} : memref<3x8x128xf32, #tpu.memory_space<vmem>>, vector<3x8x128xf32>,
    return
  }
  func.func @transform_0(%arg0: i32, %arg1: i32) -> (i32, i32, i32) {
    %c0_i32 = arith.constant 0 : i32
    %c0_i32_0 = arith.constant 0 : i32
    %c0_i32_1 = arith.constant 0 : i32
    return %arg0, %c0_i32, %c0_i32_0 : i32, i32, i32
  }
  func.func @transform_1(%arg0: i32, %arg1: i32) -> (i32, i32, i32) {
    %c0_i32 = arith.constant 0 : i32
    %c0_i32_0 = arith.constant 0 : i32
    return %arg0, %arg1, %c0_i32 : i32, i32, i32
  }
  func.func @transform_2(%arg0: i32, %arg1: i32) -> (i32, i32, i32) {
    %c0_i32 = arith.constant 0 : i32
    %c0_i32_0 = arith.constant 0 : i32
    return %arg0, %arg1, %c0_i32 : i32, i32, i32
  }
  func.func @transform_3(%arg0: i32, %arg1: i32) -> (i32, i32) {
    %c0_i32 = arith.constant 0 : i32
    %c0_i32_0 = arith.constant 0 : i32
    %c0_i32_1 = arith.constant 0 : i32
    return %c0_i32, %c0_i32_0 : i32, i32
  }
  func.func @transform_4(%arg0: i32, %arg1: i32) -> (i32, i32) {
    %c0_i32 = arith.constant 0 : i32
    %c0_i32_0 = arith.constant 0 : i32
    %c0_i32_1 = arith.constant 0 : i32
    return %c0_i32, %c0_i32_0 : i32, i32
  }
  func.func @transform_5(%arg0: i32, %arg1: i32) -> (i32, i32) {
    %c0_i32 = arith.constant 0 : i32
    %c0_i32_0 = arith.constant 0 : i32
    %c0_i32_1 = arith.constant 0 : i32
    return %c0_i32, %c0_i32_0 : i32, i32
  }
  func.func @transform_6(%arg0: i32, %arg1: i32) -> (i32, i32, i32) {
    %c0_i32 = arith.constant 0 : i32
    %c0_i32_0 = arith.constant 0 : i32
    %c0_i32_1 = arith.constant 0 : i32
    return %arg0, %c0_i32, %c0_i32_0 : i32, i32, i32
  }
}

</mosaic_0001>

<llo_original>
// kernel: tpu_custom_call.1
$region0: #{tpu_custom_call.1}
  #allocation0 [shape = 'u32[]', space=smem, size = 0x4, offset = 0x4, fixed_abs, tag = 'smem constant byte address 0x4 - core index']
  #allocation1 [shape = 'u32[144,128]{1,0:T(1,128)}', space=vmem, size = 0x12000, scoped, tag = 'internal scratch']
  #allocation2 [shape = 'bf16[3,8,128]{2,1,0:T(8,128)(2,1)}', space=vmem, size = 0x1800, scoped, tag = 'scratch operand']
  %s0 = inlined_call_operand.vmem [shape: bf16[6,8,4], index: 0, kind: input, shape index: {}]
  %s1 = inlined_call_operand.vmem [shape: bf16[6,16,4], index: 1, kind: input, shape index: {}]
  %s2 = inlined_call_operand.vmem [shape: bf16[6,16,4], index: 2, kind: input, shape index: {}]
  %s3 = inlined_call_operand.vmem [shape: bf16[4,128], index: 3, kind: input, shape index: {}]
  %s4 = inlined_call_operand.vmem [shape: bf16[4,128], index: 4, kind: input, shape index: {}]
  %s5 = inlined_call_operand.vmem [shape: bf16[4,128], index: 5, kind: input, shape index: {}]
  %s6 = inlined_call_operand.hbm [shape: f32[6,8,128], index: 6, kind: output, shape index: {}]
  %s7 = sld [smem:[#allocation0]]
  $region61: #{tpu_custom_call.1} parent=0
    _
  %s9 = ssub.s32 1, %s7
  %s10 = scalar_select 0, %s9, %s7
  $region1: #{tpu_custom_call.1} parent=0
    #allocation3 [shape = 'u8[24576]{0}', space=vmem, size = 0x6000, scoped, tag = 'output window, operand 0']
    #allocation4 [shape = 's32[2]{0}', space=sflag, size = 0x8, scoped, tag = 'scoped memory for tpu_custom_call.1']
    %11 = vsyncpa [#allocation4], 0
    %s12 = scalar_lea.sflag [#allocation4], 1
    %13 = vsyncpa %s12, 0
    loop: start=0, step=1, limit=4
    $region2: #{tpu_custom_call.1} parent=1 // loop_pre_header
      _
    $region3: #{tpu_custom_call.1} parent=1 // loop_header
      %s15 = sphi 0, %s19
      %p16 = scmp.ge.s32.totalorder %s15, 4
      %s22 = sphi 0, %s34
      %s23 = sphi 0, %s30
      %s24 = sphi 0, %s22
      %s25 = sphi 0, %s23
      %s26 = sphi 0, %s24
      %s27 = sphi 0, %s25
      %s37 = sphi 0, %s39
      %s40 = sphi 0, %s37
      %s41 = sphi 0, %s40
      %s57 = sphi 0, %s41
      %s65 = sphi 0, %s67
      %s68 = sphi 0, %s65
      %s69 = sphi 0, %s68
      %s85 = sphi 0, %s69
      %s93 = sphi 0, %s95
      %s96 = sphi 0, %s93
      %s97 = sphi 0, %s96
      %s113 = sphi 0, %s97
      %s117 = sphi 0, %s117
      %s119 = sphi 0, %s117
      %s120 = sphi 0, %s119
      %s134 = sphi 0, %s120
      %s138 = sphi 0, %s138
      %s140 = sphi 0, %s138
      %s141 = sphi 0, %s140
      %s155 = sphi 0, %s141
      %s159 = sphi 0, %s159
      %s161 = sphi 0, %s159
      %s162 = sphi 0, %s161
      %s176 = sphi 0, %s162
      %s182 = sphi 0, %s184
      %s185 = sphi 0, %s182
      %s186 = sphi 0, %s185
      %s202 = sphi 0, %s186
    $region4: #{tpu_custom_call.1} parent=1 // loop_header_branch
      %18 = sbr.rel (%p16) target = $region8
    $region5: #{tpu_custom_call.1} parent=1 // loop_body
      %s20 = ssub.s32 %s15, 1
      %s21 = ssub.s32 %s15, 2
      %s28 = sadd.s32 1, %s23
      %p29 = scmp.ge.s32.totalorder %s28, 1
      %s30 = scalar_select %p29, 0, %s28
      %s31 = sadd.s32 1, %s22
      %s32 = scalar_select %p29, %s31, %s22
      %p33 = scmp.ge.s32.totalorder %s32, 2
      %s34 = scalar_select %p33, 0, %s32
      %s35 = ssub.s32 %s22, %s34
      %p36 = scmp.eq.s32.totalorder %s35, 0
      %s38 = sadd.s32 %s37, 1
      %s39 = scalar_select %p36, %s37, %s38
      %p42 = pneg %p36
      %p43 = scmp.eq.s32.totalorder %s15, 1
      %p44 = por %p42, %p43
      %p45 = scmp.ne.s32.totalorder %s37, %s40
      %p46 = scmp.eq.s32.totalorder %s15, 0
      %p47 = por %p45, %p46
      %p48 = scmp.ne.s32.totalorder %s37, %s40
      %p49 = scmp.eq.s32.totalorder %s20, 1
      %p50 = por %p48, %p49
      %p51 = scmp.ne.s32.totalorder %s40, %s41
      %p52 = scmp.eq.s32.totalorder %s20, 0
      %p53 = por %p51, %p52
      %p54 = scmp.ne.s32.totalorder %s40, %s41
      %p55 = scmp.eq.s32.totalorder %s21, 1
      %p56 = por %p54, %p55
      %p58 = scmp.ne.s32.totalorder %s41, %s57
      %p59 = scmp.eq.s32.totalorder %s21, 0
      %p60 = por %p58, %p59
      %s61 = ssub.s32 %s22, %s34
      %s62 = ssub.s32 %s23, %s30
      %s63 = sor.u32 %s61, %s62
      %p64 = scmp.eq.s32.totalorder %s63, 0
      %s66 = sadd.s32 %s65, 1
      %s67 = scalar_select %p64, %s65, %s66
      %p70 = pneg %p64
      %p71 = scmp.eq.s32.totalorder %s15, 1
      %p72 = por %p70, %p71
      %p73 = scmp.ne.s32.totalorder %s65, %s68
      %p74 = scmp.eq.s32.totalorder %s15, 0
      %p75 = por %p73, %p74
      %p76 = scmp.ne.s32.totalorder %s65, %s68
      %p77 = scmp.eq.s32.totalorder %s20, 1
      %p78 = por %p76, %p77
      %p79 = scmp.ne.s32.totalorder %s68, %s69
      %p80 = scmp.eq.s32.totalorder %s20, 0
      %p81 = por %p79, %p80
      %p82 = scmp.ne.s32.totalorder %s68, %s69
      %p83 = scmp.eq.s32.totalorder %s21, 1
      %p84 = por %p82, %p83
      %p86 = scmp.ne.s32.totalorder %s69, %s85
      %p87 = scmp.eq.s32.totalorder %s21, 0
      %p88 = por %p86, %p87
      %s89 = ssub.s32 %s22, %s34
      %s90 = ssub.s32 %s23, %s30
      %s91 = sor.u32 %s89, %s90
      %p92 = scmp.eq.s32.totalorder %s91, 0
      %s94 = sadd.s32 %s93, 1
      %s95 = scalar_select %p92, %s93, %s94
      %p98 = pneg %p92
      %p99 = scmp.eq.s32.totalorder %s15, 1
      %p100 = por %p98, %p99
      %p101 = scmp.ne.s32.totalorder %s93, %s96
      %p102 = scmp.eq.s32.totalorder %s15, 0
      %p103 = por %p101, %p102
      %p104 = scmp.ne.s32.totalorder %s93, %s96
      %p105 = scmp.eq.s32.totalorder %s20, 1
      %p106 = por %p104, %p105
      %p107 = scmp.ne.s32.totalorder %s96, %s97
      %p108 = scmp.eq.s32.totalorder %s20, 0
      %p109 = por %p107, %p108
      %p110 = scmp.ne.s32.totalorder %s96, %s97
      %p111 = scmp.eq.s32.totalorder %s21, 1
      %p112 = por %p110, %p111
      %p114 = scmp.ne.s32.totalorder %s97, %s113
      %p115 = scmp.eq.s32.totalorder %s21, 0
      %p116 = por %p114, %p115
      %s118 = sadd.s32 %s117, 1
      %p121 = scmp.eq.s32.totalorder %s15, 1
      %p122 = scmp.ne.s32.totalorder %s117, %s119
      %p123 = scmp.eq.s32.totalorder %s15, 0
      %p124 = por %p122, %p123
      %p125 = scmp.ne.s32.totalorder %s117, %s119
      %p126 = scmp.eq.s32.totalorder %s20, 1
      %p127 = por %p125, %p126
      %p128 = scmp.ne.s32.totalorder %s119, %s120
      %p129 = scmp.eq.s32.totalorder %s20, 0
      %p130 = por %p128, %p129
      %p131 = scmp.ne.s32.totalorder %s119, %s120
      %p132 = scmp.eq.s32.totalorder %s21, 1
      %p133 = por %p131, %p132
      %p135 = scmp.ne.s32.totalorder %s120, %s134
      %p136 = scmp.eq.s32.totalorder %s21, 0
      %p137 = por %p135, %p136
      %s139 = sadd.s32 %s138, 1
      %p142 = scmp.eq.s32.totalorder %s15, 1
      %p143 = scmp.ne.s32.totalorder %s138, %s140
      %p144 = scmp.eq.s32.totalorder %s15, 0
      %p145 = por %p143, %p144
      %p146 = scmp.ne.s32.totalorder %s138, %s140
      %p147 = scmp.eq.s32.totalorder %s20, 1
      %p148 = por %p146, %p147
      %p149 = scmp.ne.s32.totalorder %s140, %s141
      %p150 = scmp.eq.s32.totalorder %s20, 0
      %p151 = por %p149, %p150
      %p152 = scmp.ne.s32.totalorder %s140, %s141
      %p153 = scmp.eq.s32.totalorder %s21, 1
      %p154 = por %p152, %p153
      %p156 = scmp.ne.s32.totalorder %s141, %s155
      %p157 = scmp.eq.s32.totalorder %s21, 0
      %p158 = por %p156, %p157
      %s160 = sadd.s32 %s159, 1
      %p163 = scmp.eq.s32.totalorder %s15, 1
      %p164 = scmp.ne.s32.totalorder %s159, %s161
      %p165 = scmp.eq.s32.totalorder %s15, 0
      %p166 = por %p164, %p165
      %p167 = scmp.ne.s32.totalorder %s159, %s161
      %p168 = scmp.eq.s32.totalorder %s20, 1
      %p169 = por %p167, %p168
      %p170 = scmp.ne.s32.totalorder %s161, %s162
      %p171 = scmp.eq.s32.totalorder %s20, 0
      %p172 = por %p170, %p171
      %p173 = scmp.ne.s32.totalorder %s161, %s162
      %p174 = scmp.eq.s32.totalorder %s21, 1
      %p175 = por %p173, %p174
      %p177 = scmp.ne.s32.totalorder %s162, %s176
      %p178 = scmp.eq.s32.totalorder %s21, 0
      %p179 = por %p177, %p178
      %s180 = ssub.s32 %s22, %s34
      %p181 = scmp.eq.s32.totalorder %s180, 0
      %s183 = sadd.s32 %s182, 1
      %s184 = scalar_select %p181, %s182, %s183
      %p187 = pneg %p181
      %p188 = scmp.eq.s32.totalorder %s15, 1
      %p189 = por %p187, %p188
      %p190 = scmp.ne.s32.totalorder %s182, %s185
      %p191 = scmp.eq.s32.totalorder %s15, 0
      %p192 = por %p190, %p191
      %p193 = scmp.ne.s32.totalorder %s182, %s185
      %p194 = scmp.eq.s32.totalorder %s20, 1
      %p195 = por %p193, %p194
      %p196 = scmp.ne.s32.totalorder %s185, %s186
      %p197 = scmp.eq.s32.totalorder %s20, 0
      %p198 = por %p196, %p197
      %p199 = scmp.ne.s32.totalorder %s185, %s186
      %p200 = scmp.eq.s32.totalorder %s21, 1
      %p201 = por %p199, %p200
      %p203 = scmp.ne.s32.totalorder %s186, %s202
      %p204 = scmp.eq.s32.totalorder %s21, 0
      %p205 = por %p203, %p204
      %p206 = scmp.le.s32.totalorder 1, %s15
      %p207 = scmp.lt.s32.totalorder %s15, 3
      %p208 = pnand %p206, %p207
      %p209 = pneg %p208
      // Predicated region
      $region9: #{tpu_custom_call.1} parent=5 // pred_check
        _
      $region10: #{tpu_custom_call.1} parent=5 // pred_check_branch
        %211 = sbr.rel (%p208) target = $region12
      $region11: #{tpu_custom_call.1} parent=5 // pred_region
        %s212 = ssub.s32 %s15, 1
        // Predicated region
        $region13: #{tpu_custom_call.1} parent=11 // pred_check
          %p213 = pneg %p130
        $region14: #{tpu_custom_call.1} parent=11 // pred_check_branch
          %215 = sbr.rel (%p213) target = $region16
        $region15: #{tpu_custom_call.1} parent=11 // pred_region
          _
        $region16: #{tpu_custom_call.1} parent=11 // pred_fallthru
          _
        // Predicated region
        $region17: #{tpu_custom_call.1} parent=11 // pred_check
          %p216 = pneg %p151
        $region18: #{tpu_custom_call.1} parent=11 // pred_check_branch
          %218 = sbr.rel (%p216) target = $region20
        $region19: #{tpu_custom_call.1} parent=11 // pred_region
          _
        $region20: #{tpu_custom_call.1} parent=11 // pred_fallthru
          _
        // Predicated region
        $region21: #{tpu_custom_call.1} parent=11 // pred_check
          %p219 = pneg %p172
        $region22: #{tpu_custom_call.1} parent=11 // pred_check_branch
          %221 = sbr.rel (%p219) target = $region24
        $region23: #{tpu_custom_call.1} parent=11 // pred_region
          _
        $region24: #{tpu_custom_call.1} parent=11 // pred_fallthru
          _
      $region12: #{tpu_custom_call.1} parent=5 // pred_fallthru
        _
      %p222 = scmp.lt.s32.totalorder %s15, 2
      // Predicated region
      $region25: #{tpu_custom_call.1} parent=5 // pred_check
        %p223 = pneg %p222
      $region26: #{tpu_custom_call.1} parent=5 // pred_check_branch
        %225 = sbr.rel (%p223) target = $region28
      $region27: #{tpu_custom_call.1} parent=5 // pred_region
        // Predicated region
        $region29: #{tpu_custom_call.1} parent=27 // pred_check
          %p226 = pneg %p47
        $region30: #{tpu_custom_call.1} parent=27 // pred_check_branch
          %228 = sbr.rel (%p226) target = $region32
        $region31: #{tpu_custom_call.1} parent=27 // pred_region
          %s229 = smul.u32 3, %s22
          %p230 = scmp.lt.s32.totalorder %s229, 5
          %s231 = scalar_select %p230, %s229, 5
          %s232 = smul.addr %s231, 4
          %s233 = scalar_lea.vmem %s0, %s232
          %s234 = smul.u32 3, %s22
        $region32: #{tpu_custom_call.1} parent=27 // pred_fallthru
          _
        // Predicated region
        $region33: #{tpu_custom_call.1} parent=27 // pred_check
          %p235 = pneg %p75
        $region34: #{tpu_custom_call.1} parent=27 // pred_check_branch
          %237 = sbr.rel (%p235) target = $region36
        $region35: #{tpu_custom_call.1} parent=27 // pred_region
          %s238 = smul.u32 3, %s22
          %s239 = smul.u32 2, %s23
          %p240 = scmp.lt.s32.totalorder %s238, 5
          %s241 = scalar_select %p240, %s238, 5
          %p242 = scmp.lt.s32.totalorder %s239, 1
          %s243 = scalar_select %p242, %s239, 1
          %s244 = smul.addr %s241, 2
          %s245 = sadd.s32 %s243, %s244
          %s246 = smul.addr %s245, 4
          %s247 = scalar_lea.vmem %s1, %s246
          %s248 = smul.u32 3, %s22
          %s249 = smul.u32 2, %s23
        $region36: #{tpu_custom_call.1} parent=27 // pred_fallthru
          _
        // Predicated region
        $region37: #{tpu_custom_call.1} parent=27 // pred_check
          %p250 = pneg %p103
        $region38: #{tpu_custom_call.1} parent=27 // pred_check_branch
          %252 = sbr.rel (%p250) target = $region40
        $region39: #{tpu_custom_call.1} parent=27 // pred_region
          %s253 = smul.u32 3, %s22
          %s254 = smul.u32 2, %s23
          %p255 = scmp.lt.s32.totalorder %s253, 5
          %s256 = scalar_select %p255, %s253, 5
          %p257 = scmp.lt.s32.totalorder %s254, 1
          %s258 = scalar_select %p257, %s254, 1
          %s259 = smul.addr %s256, 2
          %s260 = sadd.s32 %s258, %s259
          %s261 = smul.addr %s260, 4
          %s262 = scalar_lea.vmem %s2, %s261
          %s263 = smul.u32 3, %s22
          %s264 = smul.u32 2, %s23
        $region40: #{tpu_custom_call.1} parent=27 // pred_fallthru
          _
      $region28: #{tpu_custom_call.1} parent=5 // pred_fallthru
        _
      %p265 = scmp.le.s32.totalorder 1, %s15
      %p266 = scmp.lt.s32.totalorder %s15, 3
      %p267 = pnand %p265, %p266
      %p268 = pneg %p267
      // Predicated region
      $region41: #{tpu_custom_call.1} parent=5 // pred_check
        _
      $region42: #{tpu_custom_call.1} parent=5 // pred_check_branch
        %270 = sbr.rel (%p267) target = $region44
      $region43: #{tpu_custom_call.1} parent=5 // pred_region
        %s271 = ssub.s32 %s15, 1
        %s272 = smul.u32 3, %s24
        %p273 = scmp.lt.s32.totalorder %s272, 5
        %s274 = scalar_select %p273, %s272, 5
        %s275 = smul.addr %s274, 4
        %s276 = scalar_lea.vmem %s0, %s275
        %p277 = pneg %p53
        %p278 = pneg %p50
        %s279 = smul.u32 3, %s24
        %s280 = smul.u32 2, %s25
        %p281 = scmp.lt.s32.totalorder %s279, 5
        %s282 = scalar_select %p281, %s279, 5
        %p283 = scmp.lt.s32.totalorder %s280, 1
        %s284 = scalar_select %p283, %s280, 1
        %s285 = smul.addr %s282, 2
        %s286 = sadd.s32 %s284, %s285
        %s287 = smul.addr %s286, 4
        %s288 = scalar_lea.vmem %s1, %s287
        %p289 = pneg %p81
        %p290 = pneg %p78
        %s291 = smul.u32 3, %s24
        %s292 = smul.u32 2, %s25
        %p293 = scmp.lt.s32.totalorder %s291, 5
        %s294 = scalar_select %p293, %s291, 5
        %p295 = scmp.lt.s32.totalorder %s292, 1
        %s296 = scalar_select %p295, %s292, 1
        %s297 = smul.addr %s294, 2
        %s298 = sadd.s32 %s296, %s297
        %s299 = smul.addr %s298, 4
        %s300 = scalar_lea.vmem %s2, %s299
        %p301 = pneg %p109
        %p302 = pneg %p106
        %p303 = pneg %p130
        %p304 = pneg %p127
        %p305 = pneg %p151
        %p306 = pneg %p148
        %p307 = pneg %p172
        %p308 = pneg %p169
        %p309 = pneg %p198
        %p310 = pneg %p195
        %s311 = sand.u32 %s185, 1
        %s312 = scalar_lea.sflag [#allocation4], %s311
        %s313 = sand.u32 %s185, 1
        %s314 = smul.addr %s313, 24
        %s315 = scalar_lea.vmem [#allocation3], %s314
        %s316 = smul.u32 3, %s24
        %p317 = scmp.lt.s32.totalorder %s316, 5
        %s318 = scalar_select %p317, %s316, 5
        %s319 = smul.addr %s318, 4
        %s320 = scalar_lea.vmem %s0, %s319
        %s321 = smul.u32 3, %s24
        %s322 = smul.u32 3, %s24
        %s323 = smul.u32 2, %s25
        %p324 = scmp.lt.s32.totalorder %s322, 5
        %s325 = scalar_select %p324, %s322, 5
        %p326 = scmp.lt.s32.totalorder %s323, 1
        %s327 = scalar_select %p326, %s323, 1
        %s328 = smul.addr %s325, 2
        %s329 = sadd.s32 %s327, %s328
        %s330 = smul.addr %s329, 4
        %s331 = scalar_lea.vmem %s1, %s330
        %s332 = smul.u32 3, %s24
        %s333 = smul.u32 2, %s25
        %s334 = smul.u32 3, %s24
        %s335 = smul.u32 2, %s25
        %p336 = scmp.lt.s32.totalorder %s334, 5
        %s337 = scalar_select %p336, %s334, 5
        %p338 = scmp.lt.s32.totalorder %s335, 1
        %s339 = scalar_select %p338, %s335, 1
        %s340 = smul.addr %s337, 2
        %s341 = sadd.s32 %s339, %s340
        %s342 = smul.addr %s341, 4
        %s343 = scalar_lea.vmem %s2, %s342
        %s344 = smul.u32 3, %s24
        %s345 = smul.u32 2, %s25
        %s346 = smul.u32 3, %s24
        %p348 = scmp.eq.s32.totalorder %s25, 0
        // Predicated region
        $region45: #{tpu_custom_call.1} parent=43 // pred_check
          %p349 = pneg %p348
        $region46: #{tpu_custom_call.1} parent=43 // pred_check_branch
          %351 = sbr.rel (%p349) target = $region48
        $region47: #{tpu_custom_call.1} parent=43 // pred_region
          %v352 = vld [vmem:[%s320] sm:$0xf]
          %v353 = vld [vmem:[%s320 + $0x4] sm:$0xf]
          %v354 = vld [vmem:[%s320 + $0x8] sm:$0xf]
          %v355 = vld [vmem:[%s5] sm:$0x3]
          %v359 = vunpack.c.l.b16 %v352
          %v360 = vunpack.c.l.b16 %v353
          %v361 = vunpack.c.l.b16 %v354
          %v362 = vpack.c.b16 %v360, %v359
          %v363 = vpack.c.b16 %v361, %v361
          %vm364 = vcmask 31744
          %v366 = vsel %vm364, %v362, 0
          %v369 = vsel %vm364, %v363, 0
          %vm371 = vcmask 1041408
          %v373 = vsel %vm371, %v355, 0
          %375 = vmatprep.subr.bf16.mxu0 0
          %376 = vmatpush1.bf16.msra.mxu0 %v373
          %377 = vmatprep.subr.bf16.mxu0 0
          %378 = vmatpush1.bf16.msra.mxu0 0
          %379 = vmatprep.subr.bf16.mxu0 0
          %380 = vmatpush1.bf16.msra.mxu0 0
          %381 = vmatprep.subr.bf16.mxu0 0
          %382 = vmatpush1.bf16.msra.mxu0 0
          %383 = vmatprep.subr.bf16.mxu0 0
          %384 = vmatpush1.bf16.msra.mxu0 0
          %385 = vmatprep.subr.bf16.mxu0 0
          %386 = vmatpush1.bf16.msra.mxu0 0
          %387 = vmatprep.subr.bf16.mxu0 0
          %388 = vmatpush1.bf16.msra.mxu0 0
          %389 = vmatprep.subr.bf16.mxu0 0
          %390 = vmatpush1.bf16.msra.mxu0 0
          %391 = vmatprep.subr.bf16.mxu0 0
          %392 = vmatpush1.bf16.msra.mxu0 0
          %393 = vmatprep.subr.bf16.mxu0 0
          %394 = vmatpush1.bf16.msra.mxu0 0
          %395 = vmatprep.subr.bf16.mxu0 0
          %396 = vmatpush1.bf16.msra.mxu0 0
          %397 = vmatprep.subr.bf16.mxu0 0
          %398 = vmatpush1.bf16.msra.mxu0 0
          %399 = vmatprep.subr.bf16.mxu0 0
          %400 = vmatpush1.bf16.msra.mxu0 0
          %401 = vmatprep.subr.bf16.mxu0 0
          %402 = vmatpush1.bf16.msra.mxu0 0
          %403 = vmatprep.subr.bf16.mxu0 0
          %404 = vmatpush1.bf16.msra.mxu0 0
          %405 = vmatprep.subr.bf16.mxu0 0
          %406 = vmatpush1.bf16.msra.mxu0 0
          %407 = vmatprep.mubr.bf16.mxu0 0
          %408 = vmatmul.mubr.bf16.gmra.mrb[0].mxu0 %v366
          %v409 = vpop.f32.mrb[0].mxu0
          %v410 = vadd.f32 0.0, %v409
          %v411 = vpop.f32.mrb[0].mxu0
          %v412 = vpop.f32.mrb[0].mxu0
          %v413 = vadd.f32 0.0, %v412
          %v414 = vpop.f32.mrb[0].mxu0
          %415 = vmatprep.mubr.bf16.mxu0 0
          %416 = vmatmul.mubr.bf16.gmra.mrb[0].mxu0 %v369
          %v417 = vpop.f32.mrb[0].mxu0
          %v418 = vadd.f32 0.0, %v417
          %v419 = vpop.f32.mrb[0].mxu0
          %v420 = vpop.f32.mrb[0].mxu0
          %v421 = vpop.f32.mrb[0].mxu0
          %422 = vdwg.mxu0
          %v423 = vpack.c.bf16 %v410, %v410
          %v424 = vpack.c.bf16 %v413, %v413
          %v425 = vpack.c.bf16 %v418, %v418
          %426 = vst [vmem:[#allocation2] sm:$0xf] %v423
          %427 = vst [vmem:[#allocation2 + $0x4] sm:$0xf] %v424
          %428 = vst [vmem:[#allocation2 + $0x8] sm:$0xf] %v425
          %429 = vst [vmem:[%s315] sm:$0xff] 0.0
          %430 = vst [vmem:[%s315 + $0x8] sm:$0xff] 0.0
          %431 = vst [vmem:[%s315 + $0x10] sm:$0xff] 0.0
        $region48: #{tpu_custom_call.1} parent=43 // pred_fallthru
          _
        %v432 = vld [vmem:[%s331] sm:$0xf]
        %v433 = vld [vmem:[%s331 + $0x4] sm:$0xf]
        %v434 = vld [vmem:[%s331 + $0x8] sm:$0xf]
        %v435 = vld [vmem:[%s331 + $0xc] sm:$0xf]
        %v436 = vld [vmem:[%s331 + $0x10] sm:$0xf]
        %v437 = vld [vmem:[%s331 + $0x14] sm:$0xf]
        %v438 = vld [vmem:[%s343] sm:$0xf]
        %v439 = vld [vmem:[%s343 + $0x4] sm:$0xf]
        %v440 = vld [vmem:[%s343 + $0x8] sm:$0xf]
        %v441 = vld [vmem:[%s343 + $0xc] sm:$0xf]
        %v442 = vld [vmem:[%s343 + $0x10] sm:$0xf]
        %v443 = vld [vmem:[%s343 + $0x14] sm:$0xf]
        %v444 = vld [vmem:[%s4] sm:$0x3]
        %v451 = vunpack.c.l.b16 %v432
        %v452 = vunpack.c.l.b16 %v433
        %v453 = vunpack.c.l.b16 %v434
        %v454 = vunpack.c.l.b16 %v435
        %v455 = vunpack.c.l.b16 %v436
        %v456 = vunpack.c.l.b16 %v437
        %v457 = vpack.c.b16 %v452, %v451
        %v458 = vpack.c.b16 %v454, %v453
        %v459 = vpack.c.b16 %v456, %v455
        %vm460 = vcmask 31744
        %v462 = vsel %vm460, %v457, 0
        %v465 = vsel %vm460, %v458, 0
        %v468 = vsel %vm460, %v459, 0
        %vm470 = vcmask 1041408
        %v472 = vsel %vm470, %v444, 0
        %474 = vmatprep.subr.bf16.mxu0 0
        %475 = vmatpush1.bf16.msra.mxu0 %v472
        %476 = vmatprep.subr.bf16.mxu0 0
        %477 = vmatpush1.bf16.msra.mxu0 0
        %478 = vmatprep.subr.bf16.mxu0 0
        %479 = vmatpush1.bf16.msra.mxu0 0
        %480 = vmatprep.subr.bf16.mxu0 0
        %481 = vmatpush1.bf16.msra.mxu0 0
        %482 = vmatprep.subr.bf16.mxu0 0
        %483 = vmatpush1.bf16.msra.mxu0 0
        %484 = vmatprep.subr.bf16.mxu0 0
        %485 = vmatpush1.bf16.msra.mxu0 0
        %486 = vmatprep.subr.bf16.mxu0 0
        %487 = vmatpush1.bf16.msra.mxu0 0
        %488 = vmatprep.subr.bf16.mxu0 0
        %489 = vmatpush1.bf16.msra.mxu0 0
        %490 = vmatprep.subr.bf16.mxu0 0
        %491 = vmatpush1.bf16.msra.mxu0 0
        %492 = vmatprep.subr.bf16.mxu0 0
        %493 = vmatpush1.bf16.msra.mxu0 0
        %494 = vmatprep.subr.bf16.mxu0 0
        %495 = vmatpush1.bf16.msra.mxu0 0
        %496 = vmatprep.subr.bf16.mxu0 0
        %497 = vmatpush1.bf16.msra.mxu0 0
        %498 = vmatprep.subr.bf16.mxu0 0
        %499 = vmatpush1.bf16.msra.mxu0 0
        %500 = vmatprep.subr.bf16.mxu0 0
        %501 = vmatpush1.bf16.msra.mxu0 0
        %502 = vmatprep.subr.bf16.mxu0 0
        %503 = vmatpush1.bf16.msra.mxu0 0
        %504 = vmatprep.subr.bf16.mxu0 0
        %505 = vmatpush1.bf16.msra.mxu0 0
        %506 = vmatprep.mubr.bf16.mxu0 0
        %507 = vmatmul.mubr.bf16.gmra.mrb[0].mxu0 %v462
        %v508 = vpop.f32.mrb[0].mxu0
        %v509 = vadd.f32 0.0, %v508
        %v510 = vpop.f32.mrb[0].mxu0
        %v511 = vpop.f32.mrb[0].mxu0
        %v512 = vadd.f32 0.0, %v511
        %v513 = vpop.f32.mrb[0].mxu0
        %514 = vmatprep.mubr.bf16.mxu0 0
        %515 = vmatmul.mubr.bf16.gmra.mrb[0].mxu0 %v465
        %v516 = vpop.f32.mrb[0].mxu0
        %v517 = vadd.f32 0.0, %v516
        %v518 = vpop.f32.mrb[0].mxu0
        %v519 = vpop.f32.mrb[0].mxu0
        %v520 = vadd.f32 0.0, %v519
        %v521 = vpop.f32.mrb[0].mxu0
        %522 = vmatprep.mubr.bf16.mxu0 0
        %523 = vmatmul.mubr.bf16.gmra.mrb[0].mxu0 %v468
        %v524 = vpop.f32.mrb[0].mxu0
        %v525 = vadd.f32 0.0, %v524
        %v526 = vpop.f32.mrb[0].mxu0
        %v527 = vpop.f32.mrb[0].mxu0
        %v528 = vadd.f32 0.0, %v527
        %v529 = vpop.f32.mrb[0].mxu0
        %530 = vdwg.mxu0
        %v531 = vld [vmem:[%s3] sm:$0x3]
        %v538 = vunpack.c.l.b16 %v438
        %v539 = vunpack.c.l.b16 %v439
        %v540 = vunpack.c.l.b16 %v440
        %v541 = vunpack.c.l.b16 %v441
        %v542 = vunpack.c.l.b16 %v442
        %v543 = vunpack.c.l.b16 %v443
        %v544 = vpack.c.b16 %v539, %v538
        %v545 = vpack.c.b16 %v541, %v540
        %v546 = vpack.c.b16 %v543, %v542
        %v548 = vsel %vm460, %v544, 0
        %v551 = vsel %vm460, %v545, 0
        %v554 = vsel %vm460, %v546, 0
        %v557 = vsel %vm470, %v531, 0
        %559 = vmatprep.subr.bf16.mxu0 0
        %560 = vmatpush1.bf16.msra.mxu0 %v557
        %561 = vmatprep.subr.bf16.mxu0 0
        %562 = vmatpush1.bf16.msra.mxu0 0
        %563 = vmatprep.subr.bf16.mxu0 0
        %564 = vmatpush1.bf16.msra.mxu0 0
        %565 = vmatprep.subr.bf16.mxu0 0
        %566 = vmatpush1.bf16.msra.mxu0 0
        %567 = vmatprep.subr.bf16.mxu0 0
        %568 = vmatpush1.bf16.msra.mxu0 0
        %569 = vmatprep.subr.bf16.mxu0 0
        %570 = vmatpush1.bf16.msra.mxu0 0
        %571 = vmatprep.subr.bf16.mxu0 0
        %572 = vmatpush1.bf16.msra.mxu0 0
        %573 = vmatprep.subr.bf16.mxu0 0
        %574 = vmatpush1.bf16.msra.mxu0 0
        %575 = vmatprep.subr.bf16.mxu0 0
        %576 = vmatpush1.bf16.msra.mxu0 0
        %577 = vmatprep.subr.bf16.mxu0 0
        %578 = vmatpush1.bf16.msra.mxu0 0
        %579 = vmatprep.subr.bf16.mxu0 0
        %580 = vmatpush1.bf16.msra.mxu0 0
        %581 = vmatprep.subr.bf16.mxu0 0
        %582 = vmatpush1.bf16.msra.mxu0 0
        %583 = vmatprep.subr.bf16.mxu0 0
        %584 = vmatpush1.bf16.msra.mxu0 0
        %585 = vmatprep.subr.bf16.mxu0 0
        %586 = vmatpush1.bf16.msra.mxu0 0
        %587 = vmatprep.subr.bf16.mxu0 0
        %588 = vmatpush1.bf16.msra.mxu0 0
        %589 = vmatprep.subr.bf16.mxu0 0
        %590 = vmatpush1.bf16.msra.mxu0 0
        %591 = vmatprep.mubr.bf16.mxu0 0
        %592 = vmatmul.mubr.bf16.gmra.mrb[0].mxu0 %v548
        %v593 = vpop.f32.mrb[0].mxu0
        %v594 = vadd.f32 0.0, %v593
        %v595 = vpop.f32.mrb[0].mxu0
        %v596 = vpop.f32.mrb[0].mxu0
        %v597 = vadd.f32 0.0, %v596
        %v598 = vpop.f32.mrb[0].mxu0
        %599 = vmatprep.mubr.bf16.mxu0 0
        %600 = vmatmul.mubr.bf16.gmra.mrb[0].mxu0 %v551
        %v601 = vpop.f32.mrb[0].mxu0
        %v602 = vadd.f32 0.0, %v601
        %v603 = vpop.f32.mrb[0].mxu0
        %v604 = vpop.f32.mrb[0].mxu0
        %v605 = vadd.f32 0.0, %v604
        %v606 = vpop.f32.mrb[0].mxu0
        %607 = vmatprep.mubr.bf16.mxu0 0
        %608 = vmatmul.mubr.bf16.gmra.mrb[0].mxu0 %v554
        %v609 = vpop.f32.mrb[0].mxu0
        %v610 = vadd.f32 0.0, %v609
        %v611 = vpop.f32.mrb[0].mxu0
        %v612 = vpop.f32.mrb[0].mxu0
        %v613 = vadd.f32 0.0, %v612
        %v614 = vpop.f32.mrb[0].mxu0
        %615 = vdwg.mxu0
        %v616 = vpack.c.bf16 %v512, %v509
        %v617 = vpack.c.bf16 %v520, %v517
        %v618 = vpack.c.bf16 %v528, %v525
        %v619 = vpack.c.bf16 %v597, %v594
        %v620 = vpack.c.bf16 %v605, %v602
        %v621 = vpack.c.bf16 %v613, %v610
        %v622 = vld [vmem:[#allocation2] sm:$0xf]
        %v623 = vld [vmem:[#allocation2 + $0x4] sm:$0xf]
        %v624 = vld [vmem:[#allocation2 + $0x8] sm:$0xf]
        %625 = vmatprep.subr.bf16.mxu0 0
        %626 = vmatpush1.bf16.xpose.msra.mxu0 %v616
        %627 = vmatprep.subr.bf16.mxu0 0
        %628 = vmatpush1.bf16.xpose.msra.mxu0 0
        %629 = vmatprep.subr.bf16.mxu0 0
        %630 = vmatpush1.bf16.xpose.msra.mxu0 0
        %631 = vmatprep.subr.bf16.mxu0 0
        %632 = vmatpush1.bf16.xpose.msra.mxu0 0
        %633 = vmatprep.subr.bf16.mxu0 0
        %634 = vmatpush1.bf16.xpose.msra.mxu0 0
        %635 = vmatprep.subr.bf16.mxu0 0
        %636 = vmatpush1.bf16.xpose.msra.mxu0 0
        %637 = vmatprep.subr.bf16.mxu0 0
        %638 = vmatpush1.bf16.xpose.msra.mxu0 0
        %639 = vmatprep.subr.bf16.mxu0 0
        %640 = vmatpush1.bf16.xpose.msra.mxu0 0
        %641 = vmatprep.subr.bf16.mxu0 0
        %642 = vmatpush1.bf16.xpose.msra.mxu0 0
        %643 = vmatprep.subr.bf16.mxu0 0
        %644 = vmatpush1.bf16.xpose.msra.mxu0 0
        %645 = vmatprep.subr.bf16.mxu0 0
        %646 = vmatpush1.bf16.xpose.msra.mxu0 0
        %647 = vmatprep.subr.bf16.mxu0 0
        %648 = vmatpush1.bf16.xpose.msra.mxu0 0
        %649 = vmatprep.subr.bf16.mxu0 0
        %650 = vmatpush1.bf16.xpose.msra.mxu0 0
        %651 = vmatprep.subr.bf16.mxu0 0
        %652 = vmatpush1.bf16.xpose.msra.mxu0 0
        %653 = vmatprep.subr.bf16.mxu0 0
        %654 = vmatpush1.bf16.xpose.msra.mxu0 0
        %655 = vmatprep.subr.bf16.mxu0 0
        %656 = vmatpush1.bf16.xpose.msra.mxu0 0
        %657 = vmatprep.mubr.bf16.mxu0 0
        %658 = vmatmul.mubr.bf16.gmra.mrb[0].mxu0 %v622
        %v659 = vpop.f32.mrb[0].mxu0
        %v660 = vadd.f32 0.0, %v659
        %v661 = vpop.f32.mrb[0].mxu0
        %v662 = vpop.f32.mrb[0].mxu0
        %v663 = vpop.f32.mrb[0].mxu0
        %664 = vdwg.mxu0
        %665 = vmatprep.subr.bf16.mxu0 0
        %666 = vmatpush1.bf16.xpose.msra.mxu0 %v617
        %667 = vmatprep.subr.bf16.mxu0 0
        %668 = vmatpush1.bf16.xpose.msra.mxu0 0
        %669 = vmatprep.subr.bf16.mxu0 0
        %670 = vmatpush1.bf16.xpose.msra.mxu0 0
        %671 = vmatprep.subr.bf16.mxu0 0
        %672 = vmatpush1.bf16.xpose.msra.mxu0 0
        %673 = vmatprep.subr.bf16.mxu0 0
        %674 = vmatpush1.bf16.xpose.msra.mxu0 0
        %675 = vmatprep.subr.bf16.mxu0 0
        %676 = vmatpush1.bf16.xpose.msra.mxu0 0
        %677 = vmatprep.subr.bf16.mxu0 0
        %678 = vmatpush1.bf16.xpose.msra.mxu0 0
        %679 = vmatprep.subr.bf16.mxu0 0
        %680 = vmatpush1.bf16.xpose.msra.mxu0 0
        %681 = vmatprep.subr.bf16.mxu0 0
        %682 = vmatpush1.bf16.xpose.msra.mxu0 0
        %683 = vmatprep.subr.bf16.mxu0 0
        %684 = vmatpush1.bf16.xpose.msra.mxu0 0
        %685 = vmatprep.subr.bf16.mxu0 0
        %686 = vmatpush1.bf16.xpose.msra.mxu0 0
        %687 = vmatprep.subr.bf16.mxu0 0
        %688 = vmatpush1.bf16.xpose.msra.mxu0 0
        %689 = vmatprep.subr.bf16.mxu0 0
        %690 = vmatpush1.bf16.xpose.msra.mxu0 0
        %691 = vmatprep.subr.bf16.mxu0 0
        %692 = vmatpush1.bf16.xpose.msra.mxu0 0
        %693 = vmatprep.subr.bf16.mxu0 0
        %694 = vmatpush1.bf16.xpose.msra.mxu0 0
        %695 = vmatprep.subr.bf16.mxu0 0
        %696 = vmatpush1.bf16.xpose.msra.mxu0 0
        %697 = vmatprep.mubr.bf16.mxu0 0
        %698 = vmatmul.mubr.bf16.gmra.mrb[0].mxu0 %v623
        %v699 = vpop.f32.mrb[0].mxu0
        %v700 = vadd.f32 0.0, %v699
        %v701 = vpop.f32.mrb[0].mxu0
        %v702 = vpop.f32.mrb[0].mxu0
        %v703 = vpop.f32.mrb[0].mxu0
        %704 = vdwg.mxu0
        %705 = vmatprep.subr.bf16.mxu0 0
        %706 = vmatpush1.bf16.xpose.msra.mxu0 %v618
        %707 = vmatprep.subr.bf16.mxu0 0
        %708 = vmatpush1.bf16.xpose.msra.mxu0 0
        %709 = vmatprep.subr.bf16.mxu0 0
        %710 = vmatpush1.bf16.xpose.msra.mxu0 0
        %711 = vmatprep.subr.bf16.mxu0 0
        %712 = vmatpush1.bf16.xpose.msra.mxu0 0
        %713 = vmatprep.subr.bf16.mxu0 0
        %714 = vmatpush1.bf16.xpose.msra.mxu0 0
        %715 = vmatprep.subr.bf16.mxu0 0
        %716 = vmatpush1.bf16.xpose.msra.mxu0 0
        %717 = vmatprep.subr.bf16.mxu0 0
        %718 = vmatpush1.bf16.xpose.msra.mxu0 0
        %719 = vmatprep.subr.bf16.mxu0 0
        %720 = vmatpush1.bf16.xpose.msra.mxu0 0
        %721 = vmatprep.subr.bf16.mxu0 0
        %722 = vmatpush1.bf16.xpose.msra.mxu0 0
        %723 = vmatprep.subr.bf16.mxu0 0
        %724 = vmatpush1.bf16.xpose.msra.mxu0 0
        %725 = vmatprep.subr.bf16.mxu0 0
        %726 = vmatpush1.bf16.xpose.msra.mxu0 0
        %727 = vmatprep.subr.bf16.mxu0 0
        %728 = vmatpush1.bf16.xpose.msra.mxu0 0
        %729 = vmatprep.subr.bf16.mxu0 0
        %730 = vmatpush1.bf16.xpose.msra.mxu0 0
        %731 = vmatprep.subr.bf16.mxu0 0
        %732 = vmatpush1.bf16.xpose.msra.mxu0 0
        %733 = vmatprep.subr.bf16.mxu0 0
        %734 = vmatpush1.bf16.xpose.msra.mxu0 0
        %735 = vmatprep.subr.bf16.mxu0 0
        %736 = vmatpush1.bf16.xpose.msra.mxu0 0
        %737 = vmatprep.mubr.bf16.mxu0 0
        %738 = vmatmul.mubr.bf16.gmra.mrb[0].mxu0 %v624
        %v739 = vpop.f32.mrb[0].mxu0
        %v740 = vadd.f32 0.0, %v739
        %v741 = vpop.f32.mrb[0].mxu0
        %v742 = vpop.f32.mrb[0].mxu0
        %v743 = vpop.f32.mrb[0].mxu0
        %744 = vdwg.mxu0
        %vm745 = vcmask 130048
        %v746 = vsel %vm745, %v660, -inf
        %v747 = vrot.slane %v746, 4
        %v748 = vmax.f32 %v746, %v747
        %v749 = vrot.slane %v748, 2
        %v750 = vmax.f32 %v748, %v749
        %v751 = vrot.slane %v750, 1
        %v752 = vmax.f32 %v750, %v751
        %v753 = vsel %vm745, %v700, -inf
        %v754 = vrot.slane %v753, 4
        %v755 = vmax.f32 %v753, %v754
        %v756 = vrot.slane %v755, 2
        %v757 = vmax.f32 %v755, %v756
        %v758 = vrot.slane %v757, 1
        %v759 = vmax.f32 %v757, %v758
        %v760 = vsel %vm745, %v740, -inf
        %v761 = vrot.slane %v760, 4
        %v762 = vmax.f32 %v760, %v761
        %v763 = vrot.slane %v762, 2
        %v764 = vmax.f32 %v762, %v763
        %v765 = vrot.slane %v764, 1
        %v766 = vmax.f32 %v764, %v765
        %v767 = vsub.f32 %v660, %v752
        %v768 = vsub.f32 %v700, %v759
        %v769 = vsub.f32 %v740, %v766
        %v770 = vmul.f32 %v767, 1.442695
        %v771 = vpow.pop %v770
        %v772 = vmul.f32 %v768, 1.442695
        %v773 = vpow.pop %v772
        %v774 = vmul.f32 %v769, 1.442695
        %v775 = vpow.pop %v774
        %v776 = vsel %vm745, %v771, 0.0
        %v777 = vrot.slane %v776, 4
        %v778 = vadd.f32 %v776, %v777
        %v779 = vrot.slane %v778, 2
        %v780 = vadd.f32 %v778, %v779
        %v781 = vrot.slane %v780, 1
        %v782 = vadd.f32 %v780, %v781
        %v783 = vsel %vm745, %v773, 0.0
        %v784 = vrot.slane %v783, 4
        %v785 = vadd.f32 %v783, %v784
        %v786 = vrot.slane %v785, 2
        %v787 = vadd.f32 %v785, %v786
        %v788 = vrot.slane %v787, 1
        %v789 = vadd.f32 %v787, %v788
        %v790 = vsel %vm745, %v775, 0.0
        %v791 = vrot.slane %v790, 4
        %v792 = vadd.f32 %v790, %v791
        %v793 = vrot.slane %v792, 2
        %v794 = vadd.f32 %v792, %v793
        %v795 = vrot.slane %v794, 1
        %v796 = vadd.f32 %v794, %v795
        %v797 = vrcp.pop %v782
        %v798 = vmul.f32 0.25, %v797
        %v799 = vrcp.pop %v789
        %v800 = vmul.f32 0.25, %v799
        %v801 = vrcp.pop %v796
        %v802 = vmul.f32 0.25, %v801
        %v803 = vmul.f32 %v771, %v798
        %v804 = vmul.f32 %v773, %v800
        %v805 = vmul.f32 %v775, %v802
        %v806 = vld [vmem:[%s315] sm:$0xff]
        %v807 = vld [vmem:[%s315 + $0x8] sm:$0xff]
        %v808 = vld [vmem:[%s315 + $0x10] sm:$0xff]
        %v809 = vpack.c.bf16 %v803, %v803
        %v810 = vpack.c.bf16 %v804, %v804
        %v811 = vpack.c.bf16 %v805, %v805
        %v813 = vsel %vm745, %v809, 0
        %815 = vmatprep.subr.bf16.mxu0 0
        %816 = vmatpush1.bf16.msra.mxu0 %v619
        %817 = vmatprep.subr.bf16.mxu0 0
        %818 = vmatpush1.bf16.msra.mxu0 0
        %819 = vmatprep.subr.bf16.mxu0 0
        %820 = vmatpush1.bf16.msra.mxu0 0
        %821 = vmatprep.subr.bf16.mxu0 0
        %822 = vmatpush1.bf16.msra.mxu0 0
        %823 = vmatprep.subr.bf16.mxu0 0
        %824 = vmatpush1.bf16.msra.mxu0 0
        %825 = vmatprep.subr.bf16.mxu0 0
        %826 = vmatpush1.bf16.msra.mxu0 0
        %827 = vmatprep.subr.bf16.mxu0 0
        %828 = vmatpush1.bf16.msra.mxu0 0
        %829 = vmatprep.subr.bf16.mxu0 0
        %830 = vmatpush1.bf16.msra.mxu0 0
        %831 = vmatprep.subr.bf16.mxu0 0
        %832 = vmatpush1.bf16.msra.mxu0 0
        %833 = vmatprep.subr.bf16.mxu0 0
        %834 = vmatpush1.bf16.msra.mxu0 0
        %835 = vmatprep.subr.bf16.mxu0 0
        %836 = vmatpush1.bf16.msra.mxu0 0
        %837 = vmatprep.subr.bf16.mxu0 0
        %838 = vmatpush1.bf16.msra.mxu0 0
        %839 = vmatprep.subr.bf16.mxu0 0
        %840 = vmatpush1.bf16.msra.mxu0 0
        %841 = vmatprep.subr.bf16.mxu0 0
        %842 = vmatpush1.bf16.msra.mxu0 0
        %843 = vmatprep.subr.bf16.mxu0 0
        %844 = vmatpush1.bf16.msra.mxu0 0
        %845 = vmatprep.subr.bf16.mxu0 0
        %846 = vmatpush1.bf16.msra.mxu0 0
        %847 = vmatprep.mubr.bf16.mxu0 0
        %848 = vmatmul.mubr.bf16.gmra.mrb[0].mxu0 %v813
        %v849 = vpop.f32.mrb[0].mxu0
        %v850 = vadd.f32 0.0, %v849
        %v851 = vpop.f32.mrb[0].mxu0
        %v852 = vpop.f32.mrb[0].mxu0
        %v853 = vpop.f32.mrb[0].mxu0
        %854 = vdwg.mxu0
        %v856 = vsel %vm745, %v810, 0
        %858 = vmatprep.subr.bf16.mxu0 0
        %859 = vmatpush1.bf16.msra.mxu0 %v620
        %860 = vmatprep.subr.bf16.mxu0 0
        %861 = vmatpush1.bf16.msra.mxu0 0
        %862 = vmatprep.subr.bf16.mxu0 0
        %863 = vmatpush1.bf16.msra.mxu0 0
        %864 = vmatprep.subr.bf16.mxu0 0
        %865 = vmatpush1.bf16.msra.mxu0 0
        %866 = vmatprep.subr.bf16.mxu0 0
        %867 = vmatpush1.bf16.msra.mxu0 0
        %868 = vmatprep.subr.bf16.mxu0 0
        %869 = vmatpush1.bf16.msra.mxu0 0
        %870 = vmatprep.subr.bf16.mxu0 0
        %871 = vmatpush1.bf16.msra.mxu0 0
        %872 = vmatprep.subr.bf16.mxu0 0
        %873 = vmatpush1.bf16.msra.mxu0 0
        %874 = vmatprep.subr.bf16.mxu0 0
        %875 = vmatpush1.bf16.msra.mxu0 0
        %876 = vmatprep.subr.bf16.mxu0 0
        %877 = vmatpush1.bf16.msra.mxu0 0
        %878 = vmatprep.subr.bf16.mxu0 0
        %879 = vmatpush1.bf16.msra.mxu0 0
        %880 = vmatprep.subr.bf16.mxu0 0
        %881 = vmatpush1.bf16.msra.mxu0 0
        %882 = vmatprep.subr.bf16.mxu0 0
        %883 = vmatpush1.bf16.msra.mxu0 0
        %884 = vmatprep.subr.bf16.mxu0 0
        %885 = vmatpush1.bf16.msra.mxu0 0
        %886 = vmatprep.subr.bf16.mxu0 0
        %887 = vmatpush1.bf16.msra.mxu0 0
        %888 = vmatprep.subr.bf16.mxu0 0
        %889 = vmatpush1.bf16.msra.mxu0 0
        %890 = vmatprep.mubr.bf16.mxu0 0
        %891 = vmatmul.mubr.bf16.gmra.mrb[0].mxu0 %v856
        %v892 = vpop.f32.mrb[0].mxu0
        %v893 = vadd.f32 0.0, %v892
        %v894 = vpop.f32.mrb[0].mxu0
        %v895 = vpop.f32.mrb[0].mxu0
        %v896 = vpop.f32.mrb[0].mxu0
        %897 = vdwg.mxu0
        %v899 = vsel %vm745, %v811, 0
        %901 = vmatprep.subr.bf16.mxu0 0
        %902 = vmatpush1.bf16.msra.mxu0 %v621
        %903 = vmatprep.subr.bf16.mxu0 0
        %904 = vmatpush1.bf16.msra.mxu0 0
        %905 = vmatprep.subr.bf16.mxu0 0
        %906 = vmatpush1.bf16.msra.mxu0 0
        %907 = vmatprep.subr.bf16.mxu0 0
        %908 = vmatpush1.bf16.msra.mxu0 0
        %909 = vmatprep.subr.bf16.mxu0 0
        %910 = vmatpush1.bf16.msra.mxu0 0
        %911 = vmatprep.subr.bf16.mxu0 0
        %912 = vmatpush1.bf16.msra.mxu0 0
        %913 = vmatprep.subr.bf16.mxu0 0
        %914 = vmatpush1.bf16.msra.mxu0 0
        %915 = vmatprep.subr.bf16.mxu0 0
        %916 = vmatpush1.bf16.msra.mxu0 0
        %917 = vmatprep.subr.bf16.mxu0 0
        %918 = vmatpush1.bf16.msra.mxu0 0
        %919 = vmatprep.subr.bf16.mxu0 0
        %920 = vmatpush1.bf16.msra.mxu0 0
        %921 = vmatprep.subr.bf16.mxu0 0
        %922 = vmatpush1.bf16.msra.mxu0 0
        %923 = vmatprep.subr.bf16.mxu0 0
        %924 = vmatpush1.bf16.msra.mxu0 0
        %925 = vmatprep.subr.bf16.mxu0 0
        %926 = vmatpush1.bf16.msra.mxu0 0
        %927 = vmatprep.subr.bf16.mxu0 0
        %928 = vmatpush1.bf16.msra.mxu0 0
        %929 = vmatprep.subr.bf16.mxu0 0
        %930 = vmatpush1.bf16.msra.mxu0 0
        %931 = vmatprep.subr.bf16.mxu0 0
        %932 = vmatpush1.bf16.msra.mxu0 0
        %933 = vmatprep.mubr.bf16.mxu0 0
        %934 = vmatmul.mubr.bf16.gmra.mrb[0].mxu0 %v899
        %v935 = vpop.f32.mrb[0].mxu0
        %v936 = vadd.f32 0.0, %v935
        %v937 = vpop.f32.mrb[0].mxu0
        %v938 = vpop.f32.mrb[0].mxu0
        %v939 = vpop.f32.mrb[0].mxu0
        %940 = vdwg.mxu0
        %v941 = vadd.f32 %v806, %v850
        %v942 = vadd.f32 %v807, %v893
        %v943 = vadd.f32 %v808, %v936
        %944 = vst [vmem:[%s315] sm:$0xff] %v941
        %945 = vst [vmem:[%s315 + $0x8] sm:$0xff] %v942
        %946 = vst [vmem:[%s315 + $0x10] sm:$0xff] %v943
        %s947 = sand.u32 %s185, 1
        %s948 = scalar_lea.sflag [#allocation4], %s947
        %s949 = sand.u32 %s185, 1
        %s950 = smul.addr %s949, 24
        %s951 = scalar_lea.vmem [#allocation3], %s950
        // Predicated region
        $region49: #{tpu_custom_call.1} parent=43 // pred_check
          %p952 = pneg %p195
        $region50: #{tpu_custom_call.1} parent=43 // pred_check_branch
          %954 = sbr.rel (%p952) target = $region52
        $region51: #{tpu_custom_call.1} parent=43 // pred_region
          %s955 = smul.u32 3, %s24
          %s957 = ssub.s32 384, 384
          %958 = vsyncadd %s948, %s957
          %s959 = smul.addr %s955, 128
          %s960 = scalar_lea.hbm %s6, %s959
          %s961 = sshll.u32 %s951, 4
          %s962 = int_to_ptr.vmem [resolvable:$true] %s961
          %967 = dma.vmem_to_hbm [thread:$0]  %s962, 384, %s960, %s948, 128, 128, 8
        $region52: #{tpu_custom_call.1} parent=43 // pred_fallthru
          _
      $region44: #{tpu_custom_call.1} parent=5 // pred_fallthru
        _
      %p968 = scmp.le.s32.totalorder 2, %s15
      // Predicated region
      $region53: #{tpu_custom_call.1} parent=5 // pred_check
        %p969 = pneg %p968
      $region54: #{tpu_custom_call.1} parent=5 // pred_check_branch
        %971 = sbr.rel (%p969) target = $region56
      $region55: #{tpu_custom_call.1} parent=5 // pred_region
        %s972 = ssub.s32 %s15, 2
        // Predicated region
        $region57: #{tpu_custom_call.1} parent=55 // pred_check
          %p973 = pneg %p201
        $region58: #{tpu_custom_call.1} parent=55 // pred_check_branch
          %975 = sbr.rel (%p973) target = $region60
        $region59: #{tpu_custom_call.1} parent=55 // pred_region
          %s976 = sand.u32 %s186, 1
          %s977 = scalar_lea.sflag [#allocation4], %s976
          %s978 = sand.u32 %s186, 1
          %s979 = smul.addr %s978, 24
          %s980 = scalar_lea.vmem [#allocation3], %s979
          %981 = dma.done %s977, 384
        $region60: #{tpu_custom_call.1} parent=55 // pred_fallthru
          _
      $region56: #{tpu_custom_call.1} parent=5 // pred_fallthru
        _
    $region6: #{tpu_custom_call.1} parent=1 // loop_footer
      %s19 = sadd.s32 1, %s15
    $region7: #{tpu_custom_call.1} parent=1 // loop_footer_branch
      %14 = sbr.rel target = $region3
    $region8: #{tpu_custom_call.1} parent=1 // loop_exit
      _
    %982 = vsyncpa [#allocation4], 1
    %s983 = scalar_lea.sflag [#allocation4], 1
    %984 = vsyncpa %s983, 1

</llo_original>
